<compile_context>
chip_gen: v6e
topology: v6e:2x2x1
jax: 0.10.0
libtpu: 0.0.40
codegen_flags: <defaults>
</compile_context>

<pallas_src>
import jax
import jax.numpy as jnp
from jax import lax
from jax.experimental import pallas as pl
from jax.experimental.pallas import tpu as pltpu

_D = 20          # feature width of the module (fixed by the spec)
_SLAB_ROWS = 56  # W rows 0:20, R rows 24:44 (8-aligned start), bias row 48


def fixed_hidden_mlp_kernel(x_ref, p_ref, o_ref):
    x = x_ref[...]            # (B, 20) f32
    # Static, 8-sublane-aligned sub-views of the single packed parameter slab.
    w = p_ref[0:20, :]        # (20, 20) linear.weight, PyTorch (out, in) layout
    r = p_ref[24:44, :]       # (20, 20) rand_weight
    b = p_ref[48:49, :]       # (1, 20)  linear.bias

    # X = self.linear(X): contract x's features with W's `in` axis (== x @ W^T,
    # no materialized transpose).
    h = lax.dot_general(x, w, dimension_numbers=(((1,), (1,)), ((), ())),
                        preferred_element_type=jnp.float32) + b
    # X = relu(X @ rand_weight + 1)
    h = jnp.maximum(jnp.dot(h, r, preferred_element_type=jnp.float32) + 1.0, 0.0)
    # X = self.linear(X)  (shared parameters)
    h = lax.dot_general(h, w, dimension_numbers=(((1,), (1,)), ((), ())),
                        preferred_element_type=jnp.float32) + b

    # Reductions kept as (1, 1) vector values (known-good lowering; the XLU
    # reductions are not on the binding slot of this launch-bound kernel).
    tot = jnp.sum(jnp.sum(h, axis=1, keepdims=True), axis=0, keepdims=True)          # (1,1)
    ab = jnp.sum(jnp.sum(jnp.abs(h), axis=1, keepdims=True), axis=0, keepdims=True)  # (1,1)

    # while |h|.sum() > 1: h /= 2   ==>   result = sum(h) * 2^-n, where n is the
    # exact halving count.  Halving is an exact power-of-two scale in f32 and
    # commutes with the sums, so n depends only on the initial ab:
    #   n = unbiased_exponent(ab) + (mantissa != 0), clamped to 0 for ab <= 1.
    # Pure VPU integer shift/mask/compare — no EUP log/exp round-trips.
    bits = pltpu.bitcast(ab, jnp.int32) & jnp.int32(0x7FFFFFFF)   # drop sign bit
    e = (bits >> 23) - jnp.int32(127)                             # unbiased exponent
    mant = bits & jnp.int32(0x007FFFFF)
    n = e + (mant != jnp.int32(0)).astype(jnp.int32)
    # ab <= 1, ab == 0 and NaN all take "no halving", matching the strict `> 1`.
    n = jnp.where(ab > 1.0, n, jnp.zeros_like(n))

    # scale = 2^-n, rebuilt from exponent bits; split into two factors so even
    # n up to 128 (ab near f32 max) stays representable as normal floats.
    n_lo = n >> 1
    n_hi = n - n_lo
    s_lo = pltpu.bitcast((jnp.int32(127) - n_lo) << 23, jnp.float32)
    s_hi = pltpu.bitcast((jnp.int32(127) - n_hi) << 23, jnp.float32)
    res = tot * s_lo * s_hi                                       # (1,1)

    # return X.sum(): single 4-byte scalar store through SMEM.
    o_ref[0] = res[0, 0]


def pack_params(linear_w, linear_b, rand_weight):
    """Pack W / rand_weight / b into one (56, 20) slab. Do this ONCE per weight
    update (it is not part of the per-forward dispatch path)."""
    w = linear_w.astype(jnp.float32)                 # (out, in), untransposed
    r = rand_weight.astype(jnp.float32)              # (20, 20)
    b = linear_b.astype(jnp.float32).reshape(1, -1)  # (1, 20)
    slab = jnp.zeros((_SLAB_ROWS, _D), jnp.float32)
    slab = slab.at[0:_D].set(w)           # rows  0:20
    slab = slab.at[24:24 + _D].set(r)     # rows 24:44 (8-aligned start)
    slab = slab.at[48:49].set(b)          # row  48
    return slab


def fixed_hidden_mlp(x, params_slab):
    """x: (B, 20) f32; params_slab: (56, 20) from pack_params."""
    x = x.astype(jnp.float32)
    vmem = pltpu.MemorySpace.VMEM
    out = pl.pallas_call(
        fixed_hidden_mlp_kernel,
        out_shape=jax.ShapeDtypeStruct((1,), jnp.float32),
        in_specs=[
            pl.BlockSpec(memory_space=vmem),   # x
            pl.BlockSpec(memory_space=vmem),   # packed [W; R; b] slab
        ],
        out_specs=pl.BlockSpec(memory_space=pltpu.MemorySpace.SMEM),
    )(x, params_slab)
    return out[0]


def reference(x, linear_w, linear_b, rand_weight):
    h = x @ linear_w.T + linear_b
    h = jnp.maximum(h @ rand_weight + 1.0, 0.0)
    h = h @ linear_w.T + linear_b

    def cond(hh):
        return jnp.sum(jnp.abs(hh)) > 1.0

    def body(hh):
        return hh / 2.0

    h = lax.while_loop(cond, body, h)
    return jnp.sum(h)


if __name__ == "__main__":
    key = jax.random.PRNGKey(0)
    kx, krw, kw, kb = jax.random.split(key, 4)

    B, D = 2, _D
    x = jax.random.uniform(kx, (B, D), dtype=jnp.float32)               # torch.rand(2, 20)
    rand_weight = jax.random.uniform(krw, (D, D), dtype=jnp.float32)    # torch.rand((20, 20))

    # nn.Linear(20, 20) default init: U(-1/sqrt(in), 1/sqrt(in))
    bound = 1.0 / float(D) ** 0.5
    linear_w = jax.random.uniform(kw, (D, D), minval=-bound, maxval=bound,
                                  dtype=jnp.float32)                    # (out, in)
    linear_b = jax.random.uniform(kb, (D,), minval=-bound, maxval=bound,
                                  dtype=jnp.float32)

    params = pack_params(linear_w, linear_b, rand_weight)  # once per weight update
    out = jax.block_until_ready(fixed_hidden_mlp(x, params))

    ref = reference(x, linear_w, linear_b, rand_weight)
    assert jnp.allclose(out, ref, rtol=1e-5, atol=1e-5), (out, ref)
    print("KERNEL_OK")
</pallas_src>

<mosaic_0001>
module attributes {stable_mosaic.version = 11 : i64} {
  func.func @fixed_hidden_mlp_kernel(%arg0: memref<2x20xf32, #tpu.memory_space<vmem>>, %arg1: memref<56x20xf32, #tpu.memory_space<vmem>>, %arg2: memref<1xf32, #tpu.memory_space<smem>>) attributes {dimension_semantics = [], scalar_prefetch = 0 : i64, scratch_operands = 0 : i64, tpu.core_type = #tpu.core_type<tc>} {
    %c0 = arith.constant 0 : index
    %c0_0 = arith.constant 0 : index
    %0 = vector.load %arg0[%c0, %c0_0] : memref<2x20xf32, #tpu.memory_space<vmem>>, vector<2x20xf32>
    %c0_1 = arith.constant 0 : index
    %c0_2 = arith.constant 0 : index
    %1 = vector.load %arg1[%c0_1, %c0_2] : memref<56x20xf32, #tpu.memory_space<vmem>>, vector<20x20xf32>
    %c24 = arith.constant 24 : index
    %c0_3 = arith.constant 0 : index
    %2 = vector.load %arg1[%c24, %c0_3] : memref<56x20xf32, #tpu.memory_space<vmem>>, vector<20x20xf32>
    %c48 = arith.constant 48 : index
    %c0_4 = arith.constant 0 : index
    %3 = vector.load %arg1[%c48, %c0_4] : memref<56x20xf32, #tpu.memory_space<vmem>>, vector<1x20xf32>
    %cst = arith.constant dense<0.000000e+00> : vector<2x20xf32>
    %4 = tpu.matmul %0, %1, %cst {dimension_numbers = #tpu.dot_dimension_numbers<[1], [1], [0], [0], [0, 0, 1, 0], [], []>} : vector<2x20xf32>, vector<20x20xf32>, vector<2x20xf32> -> vector<2x20xf32>
    %5 = vector.broadcast %3 : vector<1x20xf32> to vector<2x20xf32>
    %6 = arith.addf %4, %5 : vector<2x20xf32>
    %cst_5 = arith.constant dense<0.000000e+00> : vector<2x20xf32>
    %7 = tpu.matmul %6, %2, %cst_5 {dimension_numbers = #tpu.dot_dimension_numbers<[1], [0], [0], [1], [0, 0, 1, 1], [], []>} : vector<2x20xf32>, vector<20x20xf32>, vector<2x20xf32> -> vector<2x20xf32>
    %cst_6 = arith.constant 1.000000e+00 : f32
    %8 = vector.broadcast %cst_6 : f32 to vector<2x20xf32>
    %9 = arith.addf %7, %8 : vector<2x20xf32>
    %cst_7 = arith.constant 0.000000e+00 : f32
    %10 = vector.broadcast %cst_7 : f32 to vector<2x20xf32>
    %11 = arith.maximumf %9, %10 : vector<2x20xf32>
    %cst_8 = arith.constant dense<0.000000e+00> : vector<2x20xf32>
    %12 = tpu.matmul %11, %1, %cst_8 {dimension_numbers = #tpu.dot_dimension_numbers<[1], [1], [0], [0], [0, 0, 1, 0], [], []>} : vector<2x20xf32>, vector<20x20xf32>, vector<2x20xf32> -> vector<2x20xf32>
    %13 = vector.broadcast %3 : vector<1x20xf32> to vector<2x20xf32>
    %14 = arith.addf %12, %13 : vector<2x20xf32>
    %cst_9 = arith.constant dense<0.000000e+00> : vector<2xf32>
    %15 = vector.multi_reduction <add>, %14, %cst_9 [1] : vector<2x20xf32> to vector<2xf32>
    %16 = vector.shape_cast %15 : vector<2xf32> to vector<2x1xf32>
    %cst_10 = arith.constant dense<0.000000e+00> : vector<1xf32>
    %17 = vector.multi_reduction <add>, %16, %cst_10 [0] : vector<2x1xf32> to vector<1xf32>
    %18 = vector.shape_cast %17 : vector<1xf32> to vector<1x1xf32>
    %19 = math.absf %14 : vector<2x20xf32>
    %cst_11 = arith.constant dense<0.000000e+00> : vector<2xf32>
    %20 = vector.multi_reduction <add>, %19, %cst_11 [1] : vector<2x20xf32> to vector<2xf32>
    %21 = vector.shape_cast %20 : vector<2xf32> to vector<2x1xf32>
    %cst_12 = arith.constant dense<0.000000e+00> : vector<1xf32>
    %22 = vector.multi_reduction <add>, %21, %cst_12 [0] : vector<2x1xf32> to vector<1xf32>
    %23 = vector.shape_cast %22 : vector<1xf32> to vector<1x1xf32>
    %24 = tpu.bitcast %23 : vector<1x1xf32> -> vector<1x1xi32>
    %c2147483647_i32 = arith.constant 2147483647 : i32
    %25 = vector.broadcast %c2147483647_i32 : i32 to vector<1x1xi32>
    %26 = arith.andi %24, %25 : vector<1x1xi32>
    %c23_i32 = arith.constant 23 : i32
    %27 = vector.broadcast %c23_i32 : i32 to vector<1x1xi32>
    %28 = arith.shrsi %26, %27 : vector<1x1xi32>
    %c127_i32 = arith.constant 127 : i32
    %29 = vector.broadcast %c127_i32 : i32 to vector<1x1xi32>
    %30 = arith.subi %28, %29 : vector<1x1xi32>
    %c8388607_i32 = arith.constant 8388607 : i32
    %31 = vector.broadcast %c8388607_i32 : i32 to vector<1x1xi32>
    %32 = arith.andi %26, %31 : vector<1x1xi32>
    %c0_i32 = arith.constant 0 : i32
    %33 = vector.broadcast %c0_i32 : i32 to vector<1x1xi32>
    %34 = arith.cmpi ne, %32, %33 : vector<1x1xi32>
    %35 = arith.extui %34 : vector<1x1xi1> to vector<1x1xi32>
    %36 = arith.addi %30, %35 : vector<1x1xi32>
    %cst_13 = arith.constant 1.000000e+00 : f32
    %37 = vector.broadcast %cst_13 : f32 to vector<1x1xf32>
    %38 = arith.cmpf ogt, %23, %37 : vector<1x1xf32>
    %c0_i32_14 = arith.constant 0 : i32
    %39 = vector.broadcast %c0_i32_14 : i32 to vector<1x1xi32>
    %40 = arith.select %38, %36, %39 : vector<1x1xi1>, vector<1x1xi32>
    %c1_i32 = arith.constant 1 : i32
    %41 = vector.broadcast %c1_i32 : i32 to vector<1x1xi32>
    %42 = arith.shrsi %40, %41 : vector<1x1xi32>
    %43 = arith.subi %40, %42 : vector<1x1xi32>
    %c127_i32_15 = arith.constant 127 : i32
    %44 = vector.broadcast %c127_i32_15 : i32 to vector<1x1xi32>
    %45 = arith.subi %44, %42 : vector<1x1xi32>
    %c23_i32_16 = arith.constant 23 : i32
    %46 = vector.broadcast %c23_i32_16 : i32 to vector<1x1xi32>
    %47 = arith.shli %45, %46 : vector<1x1xi32>
    %48 = tpu.bitcast %47 : vector<1x1xi32> -> vector<1x1xf32>
    %c127_i32_17 = arith.constant 127 : i32
    %49 = vector.broadcast %c127_i32_17 : i32 to vector<1x1xi32>
    %50 = arith.subi %49, %43 : vector<1x1xi32>
    %c23_i32_18 = arith.constant 23 : i32
    %51 = vector.broadcast %c23_i32_18 : i32 to vector<1x1xi32>
    %52 = arith.shli %50, %51 : vector<1x1xi32>
    %53 = tpu.bitcast %52 : vector<1x1xi32> -> vector<1x1xf32>
    %54 = arith.mulf %18, %48 : vector<1x1xf32>
    %55 = arith.mulf %54, %53 : vector<1x1xf32>
    %56 = vector.extract %55[0, 0] : f32 from vector<1x1xf32>
    %c0_19 = arith.constant 0 : index
    %57 = memref.load %arg2[%c0_19] : memref<1xf32, #tpu.memory_space<smem>>
    memref.store %56, %arg2[%c0_19] : memref<1xf32, #tpu.memory_space<smem>>
    return
  }
}

</mosaic_0001>

<llo_original>
// kernel: tpu_custom_call.1
$region0: #{tpu_custom_call.1}
  #allocation0 [shape = 'u32[]', space=smem, size = 0x4, offset = 0x4, fixed_abs, tag = 'smem constant byte address 0x4 - core index']
  #allocation1 [shape = 'u32[144,128]{1,0:T(1,128)}', space=vmem, size = 0x12000, scoped, tag = 'internal scratch']
  %s0 = inlined_call_operand.vmem [shape: f32[2,20], index: 0, kind: input, shape index: {}]
  %s1 = inlined_call_operand.vmem [shape: f32[56,20], index: 1, kind: input, shape index: {}]
  %s2 = inlined_call_operand.hbm [shape: f32[1], index: 2, kind: output, shape index: {}]
  %s3 = sld [smem:[#allocation0]]
  $region18: #{tpu_custom_call.1} parent=0
    _
  %s5 = ssub.s32 1, %s3
  %s6 = scalar_select 0, %s5, %s3
  $region1: #{tpu_custom_call.1} parent=0
    #allocation2 [shape = 'u8[512]{0}', space=smem, size = 0x200, scoped, tag = 'output window, operand 0, single buffered']
    #allocation3 [shape = 's32[1]{0}', space=sflag, size = 0x4, scoped, tag = 'scoped memory for tpu_custom_call.1']
    %7 = vsyncpa [#allocation3], 0
    // Predicated region
    $region2: #{tpu_custom_call.1} parent=1 // pred_check
      _
    $region3: #{tpu_custom_call.1} parent=1 // pred_check_branch
      %9 = sbr.rel (0) target = $region5
    $region4: #{tpu_custom_call.1} parent=1 // pred_region
      _
    $region5: #{tpu_custom_call.1} parent=1 // pred_fallthru
      _
    // Predicated region
    $region6: #{tpu_custom_call.1} parent=1 // pred_check
      _
    $region7: #{tpu_custom_call.1} parent=1 // pred_check_branch
      %11 = sbr.rel (0) target = $region9
    $region8: #{tpu_custom_call.1} parent=1 // pred_region
      _
    $region9: #{tpu_custom_call.1} parent=1 // pred_fallthru
      _
    %v12 = vld [vmem:[%s0] sm:$0x3]
    %v13 = vld [vmem:[%s1] sm:$0xff]
    %v14 = vld [vmem:[%s1 + $0x8] sm:$0xff]
    %v15 = vld [vmem:[%s1 + $0x10] sm:$0xf]
    %v16 = vld [vmem:[%s1 + $0x18] sm:$0xff]
    %v17 = vld [vmem:[%s1 + $0x20] sm:$0xff]
    %v18 = vld [vmem:[%s1 + $0x28] sm:$0xf]
    %v19 = vld [vmem:[%s1 + $0x30] sm:$0x1]
    %v20 = vlaneseq
    %v21 = vshrl.u32 %v20, 7
    %v22 = vsub.s32 0, %v21
    %v23 = vrot.slane %v19, %v22
    %vm24 = vcmask 162816
    %v26 = vsel %vm24, %v12, 0
    %v29 = vsel %vm24, %v13, 0
    %v32 = vsel %vm24, %v14, 0
    %v35 = vsel %vm24, %v15, 0
    %37 = vmatprep.subr.mxu0 0.0
    %38 = vmatpush1.xpose.msra.mxu0 0.0
    %39 = vmatprep.subr.mxu0 0.0
    %40 = vmatpush1.xpose.msra.mxu0 0.0
    %41 = vmatprep.subr.mxu0 0.0
    %42 = vmatpush1.xpose.msra.mxu0 0.0
    %43 = vmatprep.subr.mxu0 0.0
    %44 = vmatpush1.xpose.msra.mxu0 0.0
    %45 = vmatprep.subr.mxu0 0.0
    %46 = vmatpush1.xpose.msra.mxu0 0.0
    %47 = vmatprep.subr.mxu0 0.0
    %48 = vmatpush1.xpose.msra.mxu0 0.0
    %49 = vmatprep.subr.mxu0 0.0
    %50 = vmatpush1.xpose.msra.mxu0 0.0
    %51 = vmatprep.subr.mxu0 0.0
    %52 = vmatpush1.xpose.msra.mxu0 0.0
    %53 = vmatprep.subr.mxu0 0.0
    %54 = vmatpush1.xpose.msra.mxu0 0.0
    %55 = vmatprep.subr.mxu0 0.0
    %56 = vmatpush1.xpose.msra.mxu0 0.0
    %57 = vmatprep.subr.mxu0 0.0
    %58 = vmatpush1.xpose.msra.mxu0 0.0
    %59 = vmatprep.subr.mxu0 0.0
    %60 = vmatpush1.xpose.msra.mxu0 0.0
    %61 = vmatprep.subr.mxu0 0.0
    %62 = vmatpush1.xpose.msra.mxu0 0.0
    %63 = vmatprep.subr.mxu0 0.0
    %64 = vmatpush1.xpose.msra.mxu0 %v35
    %65 = vmatprep.subr.mxu0 0.0
    %66 = vmatpush1.xpose.msra.mxu0 %v32
    %67 = vmatprep.subr.mxu0 0.0
    %68 = vmatpush1.xpose.msra.mxu0 %v29
    %69 = vmatprep.subr.mxu0 0.0
    %70 = vmatpush2.xpose.msra.mxu0 0.0
    %71 = vmatprep.subr.mxu0 0.0
    %72 = vmatpush2.xpose.msra.mxu0 0.0
    %73 = vmatprep.subr.mxu0 0.0
    %74 = vmatpush2.xpose.msra.mxu0 0.0
    %75 = vmatprep.subr.mxu0 0.0
    %76 = vmatpush2.xpose.msra.mxu0 0.0
    %77 = vmatprep.subr.mxu0 0.0
    %78 = vmatpush2.xpose.msra.mxu0 0.0
    %79 = vmatprep.subr.mxu0 0.0
    %80 = vmatpush2.xpose.msra.mxu0 0.0
    %81 = vmatprep.subr.mxu0 0.0
    %82 = vmatpush2.xpose.msra.mxu0 0.0
    %83 = vmatprep.subr.mxu0 0.0
    %84 = vmatpush2.xpose.msra.mxu0 0.0
    %85 = vmatprep.subr.mxu0 0.0
    %86 = vmatpush2.xpose.msra.mxu0 0.0
    %87 = vmatprep.subr.mxu0 0.0
    %88 = vmatpush2.xpose.msra.mxu0 0.0
    %89 = vmatprep.subr.mxu0 0.0
    %90 = vmatpush2.xpose.msra.mxu0 0.0
    %91 = vmatprep.subr.mxu0 0.0
    %92 = vmatpush2.xpose.msra.mxu0 0.0
    %93 = vmatprep.subr.mxu0 0.0
    %94 = vmatpush2.xpose.msra.mxu0 0.0
    %95 = vmatprep.subr.mxu0 0.0
    %96 = vmatpush2.xpose.msra.mxu0 0.0
    %97 = vmatprep.subr.mxu0 0.0
    %98 = vmatpush2.xpose.msra.mxu0 0.0
    %99 = vmatprep.subr.mxu0 0.0
    %100 = vmatpush2.xpose.msra.mxu0 0.0
    %101 = vmatprep.mubr.f32.mxu0 0.0
    %102 = vmatmul.mubr.f32.gmra.mxu0 %v26
    %v103 = vpop.f32.mrf.mxu0
    %v104 = vadd.f32 %v23, %v103
    %v105 = vpop.f32.mrf.mxu0
    %106 = vdwg.mxu0
    %v108 = vsel %vm24, %v104, 0
    %vm110 = vcmask 1043456
    %v112 = vsel %vm110, %v18, 0
    %114 = vmatprep.subr.mxu0 0.0
    %115 = vmatpush1.msra.mxu0 0.0
    %116 = vmatprep.subr.mxu0 0.0
    %117 = vmatpush1.msra.mxu0 0.0
    %118 = vmatprep.subr.mxu0 0.0
    %119 = vmatpush1.msra.mxu0 0.0
    %120 = vmatprep.subr.mxu0 0.0
    %121 = vmatpush1.msra.mxu0 0.0
    %122 = vmatprep.subr.mxu0 0.0
    %123 = vmatpush1.msra.mxu0 0.0
    %124 = vmatprep.subr.mxu0 0.0
    %125 = vmatpush1.msra.mxu0 0.0
    %126 = vmatprep.subr.mxu0 0.0
    %127 = vmatpush1.msra.mxu0 0.0
    %128 = vmatprep.subr.mxu0 0.0
    %129 = vmatpush1.msra.mxu0 0.0
    %130 = vmatprep.subr.mxu0 0.0
    %131 = vmatpush1.msra.mxu0 0.0
    %132 = vmatprep.subr.mxu0 0.0
    %133 = vmatpush1.msra.mxu0 0.0
    %134 = vmatprep.subr.mxu0 0.0
    %135 = vmatpush1.msra.mxu0 0.0
    %136 = vmatprep.subr.mxu0 0.0
    %137 = vmatpush1.msra.mxu0 0.0
    %138 = vmatprep.subr.mxu0 0.0
    %139 = vmatpush1.msra.mxu0 0.0
    %140 = vmatprep.subr.mxu0 0.0
    %141 = vmatpush1.msra.mxu0 %v112
    %142 = vmatprep.subr.mxu0 0.0
    %143 = vmatpush1.msra.mxu0 %v17
    %144 = vmatprep.subr.mxu0 0.0
    %145 = vmatpush1.msra.mxu0 %v16
    %146 = vmatprep.subr.mxu0 0.0
    %147 = vmatpush2.msra.mxu0 0.0
    %148 = vmatprep.subr.mxu0 0.0
    %149 = vmatpush2.msra.mxu0 0.0
    %150 = vmatprep.subr.mxu0 0.0
    %151 = vmatpush2.msra.mxu0 0.0
    %152 = vmatprep.subr.mxu0 0.0
    %153 = vmatpush2.msra.mxu0 0.0
    %154 = vmatprep.subr.mxu0 0.0
    %155 = vmatpush2.msra.mxu0 0.0
    %156 = vmatprep.subr.mxu0 0.0
    %157 = vmatpush2.msra.mxu0 0.0
    %158 = vmatprep.subr.mxu0 0.0
    %159 = vmatpush2.msra.mxu0 0.0
    %160 = vmatprep.subr.mxu0 0.0
    %161 = vmatpush2.msra.mxu0 0.0
    %162 = vmatprep.subr.mxu0 0.0
    %163 = vmatpush2.msra.mxu0 0.0
    %164 = vmatprep.subr.mxu0 0.0
    %165 = vmatpush2.msra.mxu0 0.0
    %166 = vmatprep.subr.mxu0 0.0
    %167 = vmatpush2.msra.mxu0 0.0
    %168 = vmatprep.subr.mxu0 0.0
    %169 = vmatpush2.msra.mxu0 0.0
    %170 = vmatprep.subr.mxu0 0.0
    %171 = vmatpush2.msra.mxu0 0.0
    %172 = vmatprep.subr.mxu0 0.0
    %173 = vmatpush2.msra.mxu0 0.0
    %174 = vmatprep.subr.mxu0 0.0
    %175 = vmatpush2.msra.mxu0 0.0
    %176 = vmatprep.subr.mxu0 0.0
    %177 = vmatpush2.msra.mxu0 0.0
    %178 = vmatprep.mubr.f32.mxu0 0.0
    %179 = vmatmul.mubr.f32.gmra.mxu0 %v108
    %v180 = vpop.f32.mrf.mxu0
    %v181 = vadd.f32 1.0, %v180
    %v182 = vpop.f32.mrf.mxu0
    %183 = vdwg.mxu0
    %v184 = vmax.f32 %v181, 0.0
    %v186 = vsel %vm24, %v184, 0
    %188 = vmatprep.subr.mxu0 0.0
    %189 = vmatpush1.xpose.msra.mxu0 0.0
    %190 = vmatprep.subr.mxu0 0.0
    %191 = vmatpush1.xpose.msra.mxu0 0.0
    %192 = vmatprep.subr.mxu0 0.0
    %193 = vmatpush1.xpose.msra.mxu0 0.0
    %194 = vmatprep.subr.mxu0 0.0
    %195 = vmatpush1.xpose.msra.mxu0 0.0
    %196 = vmatprep.subr.mxu0 0.0
    %197 = vmatpush1.xpose.msra.mxu0 0.0
    %198 = vmatprep.subr.mxu0 0.0
    %199 = vmatpush1.xpose.msra.mxu0 0.0
    %200 = vmatprep.subr.mxu0 0.0
    %201 = vmatpush1.xpose.msra.mxu0 0.0
    %202 = vmatprep.subr.mxu0 0.0
    %203 = vmatpush1.xpose.msra.mxu0 0.0
    %204 = vmatprep.subr.mxu0 0.0
    %205 = vmatpush1.xpose.msra.mxu0 0.0
    %206 = vmatprep.subr.mxu0 0.0
    %207 = vmatpush1.xpose.msra.mxu0 0.0
    %208 = vmatprep.subr.mxu0 0.0
    %209 = vmatpush1.xpose.msra.mxu0 0.0
    %210 = vmatprep.subr.mxu0 0.0
    %211 = vmatpush1.xpose.msra.mxu0 0.0
    %212 = vmatprep.subr.mxu0 0.0
    %213 = vmatpush1.xpose.msra.mxu0 0.0
    %214 = vmatprep.subr.mxu0 0.0
    %215 = vmatpush1.xpose.msra.mxu0 %v35
    %216 = vmatprep.subr.mxu0 0.0
    %217 = vmatpush1.xpose.msra.mxu0 %v32
    %218 = vmatprep.subr.mxu0 0.0
    %219 = vmatpush1.xpose.msra.mxu0 %v29
    %220 = vmatprep.subr.mxu0 0.0
    %221 = vmatpush2.xpose.msra.mxu0 0.0
    %222 = vmatprep.subr.mxu0 0.0
    %223 = vmatpush2.xpose.msra.mxu0 0.0
    %224 = vmatprep.subr.mxu0 0.0
    %225 = vmatpush2.xpose.msra.mxu0 0.0
    %226 = vmatprep.subr.mxu0 0.0
    %227 = vmatpush2.xpose.msra.mxu0 0.0
    %228 = vmatprep.subr.mxu0 0.0
    %229 = vmatpush2.xpose.msra.mxu0 0.0
    %230 = vmatprep.subr.mxu0 0.0
    %231 = vmatpush2.xpose.msra.mxu0 0.0
    %232 = vmatprep.subr.mxu0 0.0
    %233 = vmatpush2.xpose.msra.mxu0 0.0
    %234 = vmatprep.subr.mxu0 0.0
    %235 = vmatpush2.xpose.msra.mxu0 0.0
    %236 = vmatprep.subr.mxu0 0.0
    %237 = vmatpush2.xpose.msra.mxu0 0.0
    %238 = vmatprep.subr.mxu0 0.0
    %239 = vmatpush2.xpose.msra.mxu0 0.0
    %240 = vmatprep.subr.mxu0 0.0
    %241 = vmatpush2.xpose.msra.mxu0 0.0
    %242 = vmatprep.subr.mxu0 0.0
    %243 = vmatpush2.xpose.msra.mxu0 0.0
    %244 = vmatprep.subr.mxu0 0.0
    %245 = vmatpush2.xpose.msra.mxu0 0.0
    %246 = vmatprep.subr.mxu0 0.0
    %247 = vmatpush2.xpose.msra.mxu0 0.0
    %248 = vmatprep.subr.mxu0 0.0
    %249 = vmatpush2.xpose.msra.mxu0 0.0
    %250 = vmatprep.subr.mxu0 0.0
    %251 = vmatpush2.xpose.msra.mxu0 0.0
    %252 = vmatprep.mubr.f32.mxu0 0.0
    %253 = vmatmul.mubr.f32.gmra.mxu0 %v186
    %v254 = vpop.f32.mrf.mxu0
    %v255 = vadd.f32 %v23, %v254
    %v256 = vpop.f32.mrf.mxu0
    %257 = vdwg.mxu0
    %vm258 = vcmask 156672
    %v259 = vsel %vm258, %v255, 0.0
    %260 = vadd.xlane.f32.xlu0 %v259
    %v261 = vpop.xlane.xlu0 %260
    %vm262 = vcmask 1041408
    %v263 = vsel %vm262, %v261, 0.0
    %v264 = vrot.slane %v263, 4
    %v265 = vadd.f32 %v263, %v264
    %v266 = vrot.slane %v265, 2
    %v267 = vadd.f32 %v265, %v266
    %v268 = vrot.slane %v267, 1
    %v269 = vadd.f32 %v267, %v268
    %v270 = vand.u32 2147483647, %v255
    %v271 = vsel %vm258, %v270, 0.0
    %272 = vadd.xlane.f32.xlu0 %v271
    %v273 = vpop.xlane.xlu0 %272
    %v274 = vsel %vm262, %v273, 0.0
    %v275 = vrot.slane %v274, 4
    %v276 = vadd.f32 %v274, %v275
    %v277 = vrot.slane %v276, 2
    %v278 = vadd.f32 %v276, %v277
    %v279 = vrot.slane %v278, 1
    %v280 = vadd.f32 %v278, %v279
    %v282 = vand.u32 %v280, 2147483647
    %v283 = vshra.s32 %v282, 23
    %v284 = vsub.s32 %v283, 127
    %v285 = vand.u32 %v282, 8388607
    %vm286 = vcmp.ne.s32.totalorder %v285, 0
    %v287 = vsel %vm286, 1, 0
    %v288 = vadd.s32 %v284, %v287
    %vm289 = vcmp.gt.f32.partialorder %v280, 1.0
    %v290 = vsel %vm289, %v288, 0
    %v291 = vshra.s32 %v290, 1
    %v292 = vsub.s32 %v290, %v291
    %v293 = vsub.s32 127, %v291
    %v294 = vshll.u32 %v293, 23
    %v296 = vsub.s32 127, %v292
    %v297 = vshll.u32 %v296, 23
    %v299 = vmul.f32 %v269, %v294
    %v300 = vmul.f32 %v299, %v297
    %s301 = vtos %v300
    %s302 = scalar_lea.smem [#allocation2], 0
    %303 = sst [smem:[%s302]] %s301
    // Predicated region
    $region10: #{tpu_custom_call.1} parent=1 // pred_check
      _
    $region11: #{tpu_custom_call.1} parent=1 // pred_check_branch
      %305 = sbr.rel (0) target = $region13
    $region12: #{tpu_custom_call.1} parent=1 // pred_region
      %s307 = ssub.s32 16, 16
      %308 = vsyncadd [#allocation3], %s307
      %311 = dma.smem_to_hbm [#allocation2], 16, %s2, [#allocation3]
    $region13: #{tpu_custom_call.1} parent=1 // pred_fallthru
      _
    // Predicated region
    $region14: #{tpu_custom_call.1} parent=1 // pred_check
      _
    $region15: #{tpu_custom_call.1} parent=1 // pred_check_branch
      %313 = sbr.rel (0) target = $region17
    $region16: #{tpu_custom_call.1} parent=1 // pred_region
      %314 = dma.done [#allocation3], 16
    $region17: #{tpu_custom_call.1} parent=1 // pred_fallthru
      _
    %315 = sfence
    %316 = vsyncpa [#allocation3], 1

</llo_original>
